<compile_context>
chip_gen: v5e
topology: v5e:2x2
jax: 0.10.0
libtpu: 0.0.40
codegen_flags: <defaults>
</compile_context>

<pallas_src>
import functools

import jax
import jax.numpy as jnp
from jax.experimental import pallas as pl
from jax.experimental.pallas import tpu as pltpu


def _focal_loss_kernel(pred_ref, target_ref, out_ref, acc_ref, *,
                       gamma, alpha, n_rows, tm):
    i = pl.program_id(0)

    @pl.when(i == 0)
    def _():
        acc_ref[...] = jnp.zeros_like(acc_ref)

    pred = pred_ref[...].astype(jnp.float32)        # (TM, C) f32 in-register
    tgt = target_ref[...]                           # (TM, 1) int32

    # Numerically-stable log-softmax pieces (all reductions stay within a row).
    m = jnp.max(pred, axis=1, keepdims=True)        # (TM, 1)
    z = pred - m                                    # (TM, C)
    lse = jnp.log(jnp.sum(jnp.exp(z), axis=1, keepdims=True))  # (TM, 1)

    # Gather the target-class (already max-shifted) logit via a one-hot mask.
    col = jax.lax.broadcasted_iota(jnp.int32, pred.shape, dimension=1)
    onehot = (col == tgt).astype(jnp.float32)       # (TM, C)
    z_t = jnp.sum(z * onehot, axis=1, keepdims=True)            # (TM, 1)

    log_pt = z_t - lse                              # log softmax at target
    pt = jnp.exp(log_pt)                            # softmax prob at target

    # Focal modulating factor: avoid jnp.power (EUP exp+log, NaN at pt==1 for
    # gamma==0) for small-integer gamma -> plain VPU multiplies.
    one_minus_pt = 1.0 - pt
    g = float(gamma)
    if g == 0.0:
        fw = jnp.ones_like(pt)
    elif g > 0.0 and g == int(g) and int(g) <= 8:
        fw = one_minus_pt
        for _ in range(int(g) - 1):
            fw = fw * one_minus_pt
    else:
        fw = jnp.power(one_minus_pt, g)

    per_sample = -(float(alpha) * fw) * log_pt      # (TM, 1)

    # Mask rows padded in by pl.cdiv on the last (ragged) tile.
    row = jax.lax.broadcasted_iota(jnp.int32, per_sample.shape, 0) + i * tm
    per_sample = jnp.where(row < n_rows, per_sample, 0.0)

    acc_ref[...] += jnp.sum(per_sample, axis=0, keepdims=True)  # (1, 1)

    @pl.when(i == pl.num_programs(0) - 1)
    def _():
        out_ref[...] = acc_ref[...] * (1.0 / float(n_rows))


def multi_class_focal_loss(pred, target, gamma=2.0, alpha=1.0,
                           max_rows_per_tile=None):
    """JAX/Pallas equivalent of MultiClassFocalLoss().forward(pred, target).

    pred:   (N, C) float array of logits (f32 or bf16 — not re-cast in HBM).
    target: (N,) integer class labels.
    Returns a scalar float32 loss (mean over N).
    """
    pred = jnp.asarray(pred)                        # keep input dtype (bf16 ok)
    target = jnp.asarray(target, dtype=jnp.int32).reshape(-1, 1)  # (N, 1)
    n, c = pred.shape

    # Tile size: cap the combined lane-padded VMEM footprint of one pipeline
    # slot (pred block + int32 target block, both padded to 128 lanes) at
    # ~4 MiB so two buffered slots (~8 MiB) fit the scoped-VMEM default on
    # every generation.  Also cap rows at 4096 (diminishing DMA returns).
    pred_row_bytes = pl.cdiv(c, 128) * 128 * pred.dtype.itemsize
    tgt_row_bytes = 128 * 4
    row_bytes = pred_row_bytes + tgt_row_bytes
    tm_cap = max(8, (4 << 20) // row_bytes)
    tm_cap = min(tm_cap, 4096)
    tm_cap = max(8, (tm_cap // 8) * 8)              # keep sublane divisibility
    if max_rows_per_tile is not None:
        tm_cap = max(8, (int(max_rows_per_tile) // 8) * 8)
    tm = n if n <= tm_cap else tm_cap
    num_tiles = pl.cdiv(n, tm)

    kernel = functools.partial(_focal_loss_kernel,
                               gamma=float(gamma), alpha=float(alpha),
                               n_rows=n, tm=tm)

    cost = pl.CostEstimate(
        flops=8 * n * c,
        transcendentals=n * (c + 2),
        bytes_accessed=n * c * pred.dtype.itemsize + n * 4 + 4,
    )

    out = pl.pallas_call(
        kernel,
        out_shape=jax.ShapeDtypeStruct((1, 1), jnp.float32),
        grid=(num_tiles,),
        in_specs=[
            pl.BlockSpec((tm, c), lambda i: (i, 0)),
            pl.BlockSpec((tm, 1), lambda i: (i, 0)),
        ],
        out_specs=pl.BlockSpec((1, 1), lambda i: (0, 0)),
        scratch_shapes=[pltpu.VMEM((1, 1), jnp.float32)],
        compiler_params=pltpu.CompilerParams(
            dimension_semantics=("arbitrary",)),
        cost_estimate=cost,
    )(pred, target)
    return out[0, 0]


def _reference(pred, target, gamma=2.0, alpha=1.0):
    # Pure-JAX reference matching the PyTorch softmax_focal_loss semantics.
    probs = jax.nn.softmax(pred.astype(jnp.float32), axis=1)
    pt = probs[jnp.arange(pred.shape[0]), target.astype(jnp.int32)]
    focal_weight = alpha * (1.0 - pt) ** gamma
    return jnp.mean(-focal_weight * jnp.log(pt))


if __name__ == "__main__":
    key = jax.random.PRNGKey(0)
    k1, k2 = jax.random.split(key)

    # Small canonical shape: batch=8 samples, 16 classes.
    N, C = 8, 16
    pred = jax.random.normal(k1, (N, C), dtype=jnp.float32)
    target = jax.random.randint(k2, (N,), 0, C, dtype=jnp.int32)

    loss = multi_class_focal_loss(pred, target, gamma=2.0, alpha=1.0)
    loss = jax.block_until_ready(loss)
    ref = _reference(pred, target, gamma=2.0, alpha=1.0)
    assert jnp.allclose(loss, ref, rtol=1e-5, atol=1e-6), (loss, ref)

    # Multi-tile grid with a ragged last block (exercises the masking +
    # cross-tile accumulation path): force a small tile via the override.
    N2, C2 = 300, 16
    k3, k4 = jax.random.split(k1)
    pred2 = jax.random.normal(k3, (N2, C2), dtype=jnp.float32)
    target2 = jax.random.randint(k4, (N2,), 0, C2, dtype=jnp.int32)
    loss2 = multi_class_focal_loss(pred2, target2, gamma=2.0, alpha=1.0,
                                   max_rows_per_tile=128)
    loss2 = jax.block_until_ready(loss2)
    ref2 = _reference(pred2, target2, gamma=2.0, alpha=1.0)
    assert jnp.allclose(loss2, ref2, rtol=1e-5, atol=1e-6), (loss2, ref2)

    # bf16 logits flow straight into the kernel (no HBM re-cast).
    pred3 = pred2.astype(jnp.bfloat16)
    loss3 = multi_class_focal_loss(pred3, target2, gamma=2.0, alpha=1.0)
    loss3 = jax.block_until_ready(loss3)
    ref3 = _reference(pred3, target2, gamma=2.0, alpha=1.0)
    assert jnp.allclose(loss3, ref3, rtol=1e-4, atol=1e-5), (loss3, ref3)

    print("KERNEL_OK")
</pallas_src>

<mosaic_0001>
module attributes {stable_mosaic.version = 11 : i64} {
  func.func @_focal_loss_kernel(%arg0: i32, %arg1: memref<8x16xf32, #tpu.memory_space<vmem>>, %arg2: memref<8x1xi32, #tpu.memory_space<vmem>>, %arg3: memref<1x1xf32, #tpu.memory_space<vmem>>, %arg4: memref<1x1xf32, #tpu.memory_space<vmem>>) attributes {dimension_semantics = [#tpu.dimension_semantics<arbitrary>], iteration_bounds = array<i64: 1>, scalar_prefetch = 0 : i64, scratch_operands = 1 : i64, tpu.core_type = #tpu.core_type<tc>, window_params = [{transform_indices = @transform_0, window_bounds = array<i64: 8, 16>}, {transform_indices = @transform_1, window_bounds = array<i64: 8, 1>}, {pipeline_mode = #tpu.pipeline_mode<synchronous>, transform_indices = @transform_2, window_bounds = array<i64: 1, 1>}]} {
    %c0_i32 = arith.constant 0 : i32
    %0 = arith.cmpi eq, %arg0, %c0_i32 : i32
    %1 = arith.extui %0 : i1 to i32
    %c0_i32_0 = arith.constant 0 : i32
    %2 = arith.cmpi ne, %1, %c0_i32_0 : i32
    scf.if %2 {
      %cst_18 = arith.constant 0.000000e+00 : f32
      %47 = vector.broadcast %cst_18 : f32 to vector<1x1xf32>
      %c0_19 = arith.constant 0 : index
      %c0_20 = arith.constant 0 : index
      %48 = vector.load %arg4[%c0_19, %c0_20] : memref<1x1xf32, #tpu.memory_space<vmem>>, vector<1x1xf32>
      tpu.vector_store %arg4[%c0_19, %c0_20], %47 {strides = array<i32>} : memref<1x1xf32, #tpu.memory_space<vmem>>, vector<1x1xf32>,
    } else {
    }
    %c0 = arith.constant 0 : index
    %c0_1 = arith.constant 0 : index
    %3 = vector.load %arg1[%c0, %c0_1] : memref<8x16xf32, #tpu.memory_space<vmem>>, vector<8x16xf32>
    %c0_2 = arith.constant 0 : index
    %c0_3 = arith.constant 0 : index
    %4 = vector.load %arg2[%c0_2, %c0_3] : memref<8x1xi32, #tpu.memory_space<vmem>>, vector<8x1xi32>
    %cst = arith.constant dense<0xFF800000> : vector<8xf32>
    %5 = vector.multi_reduction <maximumf>, %3, %cst [1] : vector<8x16xf32> to vector<8xf32>
    %6 = vector.shape_cast %5 : vector<8xf32> to vector<8x1xf32>
    %7 = vector.broadcast %6 : vector<8x1xf32> to vector<8x16xf32>
    %8 = arith.subf %3, %7 : vector<8x16xf32>
    %9 = math.exp %8 : vector<8x16xf32>
    %cst_4 = arith.constant dense<0.000000e+00> : vector<8xf32>
    %10 = vector.multi_reduction <add>, %9, %cst_4 [1] : vector<8x16xf32> to vector<8xf32>
    %11 = vector.shape_cast %10 : vector<8xf32> to vector<8x1xf32>
    %12 = math.log %11 : vector<8x1xf32>
    %13 = tpu.iota {dimensions = array<i32: 1>} : vector<8x16xi32>
    %14 = vector.broadcast %4 : vector<8x1xi32> to vector<8x16xi32>
    %15 = arith.cmpi eq, %13, %14 : vector<8x16xi32>
    %16 = arith.extui %15 : vector<8x16xi1> to vector<8x16xi32>
    %17 = arith.sitofp %16 : vector<8x16xi32> to vector<8x16xf32>
    %18 = arith.mulf %8, %17 : vector<8x16xf32>
    %cst_5 = arith.constant dense<0.000000e+00> : vector<8xf32>
    %19 = vector.multi_reduction <add>, %18, %cst_5 [1] : vector<8x16xf32> to vector<8xf32>
    %20 = vector.shape_cast %19 : vector<8xf32> to vector<8x1xf32>
    %21 = arith.subf %20, %12 : vector<8x1xf32>
    %22 = math.exp %21 : vector<8x1xf32>
    %cst_6 = arith.constant 1.000000e+00 : f32
    %23 = vector.broadcast %cst_6 : f32 to vector<8x1xf32>
    %24 = arith.subf %23, %22 : vector<8x1xf32>
    %25 = arith.mulf %24, %24 : vector<8x1xf32>
    %cst_7 = arith.constant 1.000000e+00 : f32
    %26 = vector.broadcast %cst_7 : f32 to vector<8x1xf32>
    %27 = arith.mulf %26, %25 : vector<8x1xf32>
    %cst_8 = arith.constant 0.000000e+00 : f32
    %28 = vector.broadcast %cst_8 : f32 to vector<8x1xf32>
    %29 = arith.subf %28, %27 : vector<8x1xf32>
    %30 = arith.mulf %29, %21 : vector<8x1xf32>
    %31 = tpu.iota {dimensions = array<i32: 0>} : vector<8x1xi32>
    %c8_i32 = arith.constant 8 : i32
    %32 = arith.muli %arg0, %c8_i32 : i32
    %33 = vector.broadcast %32 : i32 to vector<8x1xi32>
    %34 = arith.addi %31, %33 : vector<8x1xi32>
    %c8_i32_9 = arith.constant 8 : i32
    %35 = vector.broadcast %c8_i32_9 : i32 to vector<8x1xi32>
    %36 = arith.cmpi slt, %34, %35 : vector<8x1xi32>
    %cst_10 = arith.constant 0.000000e+00 : f32
    %37 = vector.broadcast %cst_10 : f32 to vector<8x1xf32>
    %38 = arith.select %36, %30, %37 : vector<8x1xi1>, vector<8x1xf32>
    %c0_11 = arith.constant 0 : index
    %c0_12 = arith.constant 0 : index
    %39 = vector.load %arg4[%c0_11, %c0_12] : memref<1x1xf32, #tpu.memory_space<vmem>>, vector<1x1xf32>
    %cst_13 = arith.constant dense<0.000000e+00> : vector<1xf32>
    %40 = vector.multi_reduction <add>, %38, %cst_13 [0] : vector<8x1xf32> to vector<1xf32>
    %41 = vector.shape_cast %40 : vector<1xf32> to vector<1x1xf32>
    %42 = arith.addf %39, %41 : vector<1x1xf32>
    %c0_14 = arith.constant 0 : index
    %c0_15 = arith.constant 0 : index
    %43 = vector.load %arg4[%c0_14, %c0_15] : memref<1x1xf32, #tpu.memory_space<vmem>>, vector<1x1xf32>
    tpu.vector_store %arg4[%c0_14, %c0_15], %42 {strides = array<i32>} : memref<1x1xf32, #tpu.memory_space<vmem>>, vector<1x1xf32>,
    %c0_i32_16 = arith.constant 0 : i32
    %44 = arith.cmpi eq, %arg0, %c0_i32_16 : i32
    %45 = arith.extui %44 : i1 to i32
    %c0_i32_17 = arith.constant 0 : i32
    %46 = arith.cmpi ne, %45, %c0_i32_17 : i32
    scf.if %46 {
      %c0_18 = arith.constant 0 : index
      %c0_19 = arith.constant 0 : index
      %47 = vector.load %arg4[%c0_18, %c0_19] : memref<1x1xf32, #tpu.memory_space<vmem>>, vector<1x1xf32>
      %cst_20 = arith.constant 1.250000e-01 : f32
      %48 = vector.broadcast %cst_20 : f32 to vector<1x1xf32>
      %49 = arith.mulf %47, %48 : vector<1x1xf32>
      %c0_21 = arith.constant 0 : index
      %c0_22 = arith.constant 0 : index
      %50 = vector.load %arg3[%c0_21, %c0_22] : memref<1x1xf32, #tpu.memory_space<vmem>>, vector<1x1xf32>
      tpu.vector_store %arg3[%c0_21, %c0_22], %49 {strides = array<i32>} : memref<1x1xf32, #tpu.memory_space<vmem>>, vector<1x1xf32>,
    } else {
    }
    return
  }
  func.func @transform_0(%arg0: i32) -> (i32, i32) {
    %c0_i32 = arith.constant 0 : i32
    %c0_i32_0 = arith.constant 0 : i32
    return %arg0, %c0_i32 : i32, i32
  }
  func.func @transform_1(%arg0: i32) -> (i32, i32) {
    %c0_i32 = arith.constant 0 : i32
    %c0_i32_0 = arith.constant 0 : i32
    return %arg0, %c0_i32 : i32, i32
  }
  func.func @transform_2(%arg0: i32) -> (i32, i32) {
    %c0_i32 = arith.constant 0 : i32
    %c0_i32_0 = arith.constant 0 : i32
    %c0_i32_1 = arith.constant 0 : i32
    return %c0_i32, %c0_i32_0 : i32, i32
  }
}

</mosaic_0001>

<llo_original>
// kernel: tpu_custom_call.1
$region0: #{tpu_custom_call.1}
  #allocation0 [shape = 'u32[]', space=smem, size = 0x4, offset = 0x4, fixed_abs, tag = 'smem constant byte address 0x4 - core index']
  #allocation1 [shape = 'u32[72,128]{1,0:T(1,128)}', space=vmem, size = 0x9000, scoped, tag = 'internal scratch']
  #allocation2 [shape = 'f32[1,1]{1,0:T(1,128)}', space=vmem, size = 0x200, scoped, tag = 'scratch operand']
  %s0 = inlined_call_operand.vmem [shape: f32[8,16], index: 0, kind: input, shape index: {}]
  %s1 = inlined_call_operand.vmem [shape: s32[8,1], index: 1, kind: input, shape index: {}]
  %s2 = inlined_call_operand.hbm [shape: f32[1,1], index: 2, kind: output, shape index: {}]
  %s3 = sld [smem:[#allocation0]]
  $region26: #{tpu_custom_call.1} parent=0
    _
  %s5 = ssub.s32 1, %s3
  %s6 = scalar_select 0, %s5, %s3
  $region1: #{tpu_custom_call.1} parent=0
    #allocation3 [shape = 'u8[512]{0}', space=vmem, size = 0x400, scoped, tag = 'output window, operand 0, single buffered']
    #allocation4 [shape = 's32[1]{0}', space=sflag, size = 0x4, scoped, tag = 'scoped memory for tpu_custom_call.1']
    %7 = vsyncpa [#allocation4], 0
    // Predicated region
    $region2: #{tpu_custom_call.1} parent=1 // pred_check
      _
    $region3: #{tpu_custom_call.1} parent=1 // pred_check_branch
      %9 = sbr.rel (0) target = $region5
    $region4: #{tpu_custom_call.1} parent=1 // pred_region
      _
    $region5: #{tpu_custom_call.1} parent=1 // pred_fallthru
      _
    // Predicated region
    $region6: #{tpu_custom_call.1} parent=1 // pred_check
      _
    $region7: #{tpu_custom_call.1} parent=1 // pred_check_branch
      %11 = sbr.rel (0) target = $region9
    $region8: #{tpu_custom_call.1} parent=1 // pred_region
      _
    $region9: #{tpu_custom_call.1} parent=1 // pred_fallthru
      _
    %p12 = scmp.eq.s32.totalorder 0, 0
    // Predicated region
    $region10: #{tpu_custom_call.1} parent=1 // pred_check
      %p13 = pneg %p12
    $region11: #{tpu_custom_call.1} parent=1 // pred_check_branch
      %15 = sbr.rel (%p13) target = $region13
    $region12: #{tpu_custom_call.1} parent=1 // pred_region
      %vm16 = vcmask 0
      %17 = vst.msk [vmem:[#allocation2] sm:$0x1] %vm16, 0.0
    $region13: #{tpu_custom_call.1} parent=1 // pred_fallthru
      _
    %v18 = vld [vmem:[%s0] sm:$0xff]
    %v19 = vld [vmem:[%s1] sm:$0xff]
    %vm20 = vcmask 130048
    %v21 = vsel %vm20, %v18, -inf
    %22 = vmax.xlane.f32.xlu0 %v21
    %v23 = vpop.xlane.xlu0 %22
    %v24 = vsub.f32 %v18, %v23
    %v25 = vmul.f32 %v24, 1.442695
    %v26 = vpow.pop %v25
    %v27 = vsel %vm20, %v26, 0.0
    %28 = vadd.xlane.f32.xlu0 %v27
    %v29 = vpop.xlane.xlu0 %28
    %v30 = vlog2.pop %v29
    %v31 = vmul.f32 %v30, 0.6931472
    %v32 = vlaneseq
    %v33 = vand.u32 %v32, 127
    %34 = vset.pattern.permute.xlu0 0
    %35 = vperm.xlu0 %34, %v19
    %v36 = vpop.permute.xlu0 %35
    %vm37 = vcmp.eq.s32.totalorder %v33, %v36
    %v38 = vsel %vm37, 1, 0
    %v39 = vcvt.s32.f32 %v38
    %v40 = vmul.f32 %v24, %v39
    %v41 = vsel %vm20, %v40, 0.0
    %42 = vadd.xlane.f32.xlu0 %v41
    %v43 = vpop.xlane.xlu0 %42
    %v44 = vsub.f32 %v43, %v31
    %v45 = vmul.f32 %v44, 1.442695
    %v46 = vpow.pop %v45
    %v47 = vsub.f32 1.0, %v46
    %v48 = vmul.f32 %v47, %v47
    %v49 = vsub.f32 0.0, %v48
    %v50 = vmul.f32 %v49, %v44
    %v51 = vlaneseq
    %v52 = vshrl.u32 %v51, 7
    %s53 = smul.u32 0, 8
    %v54 = vstv %s53
    %v55 = vadd.s32 %v52, %v54
    %vm56 = vcmp.lt.s32.totalorder %v55, 8
    %v57 = vsel %vm56, %v50, 0.0
    %v58 = vld [vmem:[#allocation2] sm:$0x1]
    %v59 = vrot.slane %v57, 4
    %v60 = vadd.f32 %v57, %v59
    %v61 = vrot.slane %v60, 2
    %v62 = vadd.f32 %v60, %v61
    %v63 = vrot.slane %v62, 1
    %v64 = vadd.f32 %v62, %v63
    %v65 = vadd.f32 %v58, %v64
    %vm66 = vcmask 0
    %67 = vst.msk [vmem:[#allocation2] sm:$0x1] %vm66, %v65
    // Predicated region
    $region14: #{tpu_custom_call.1} parent=1 // pred_check
      %p68 = pneg %p12
    $region15: #{tpu_custom_call.1} parent=1 // pred_check_branch
      %70 = sbr.rel (%p68) target = $region17
    $region16: #{tpu_custom_call.1} parent=1 // pred_region
      %v71 = vld [vmem:[#allocation2] sm:$0x1]
      %v72 = vmul.f32 %v71, 0.125
      %73 = vst.msk [vmem:[#allocation3] sm:$0x1] %vm66, %v72
    $region17: #{tpu_custom_call.1} parent=1 // pred_fallthru
      _
    // Predicated region
    $region18: #{tpu_custom_call.1} parent=1 // pred_check
      _
    $region19: #{tpu_custom_call.1} parent=1 // pred_check_branch
      %75 = sbr.rel (0) target = $region21
    $region20: #{tpu_custom_call.1} parent=1 // pred_region
      %77 = vsyncadd [#allocation4], 0
      %s79 = sshll.u32 [#allocation3], 4
      %s80 = int_to_ptr.vmem [resolvable:$true] %s79
      %s81 = sshll.u32 %s2, 4
      %s82 = int_to_ptr.hbm [resolvable:$true] %s81
      %84 = dma.vmem_to_hbm [thread:$0]  %s80, 16, %s82, [#allocation4]
    $region21: #{tpu_custom_call.1} parent=1 // pred_fallthru
      _
    // Predicated region
    $region22: #{tpu_custom_call.1} parent=1 // pred_check
      _
    $region23: #{tpu_custom_call.1} parent=1 // pred_check_branch
      %86 = sbr.rel (0) target = $region25
    $region24: #{tpu_custom_call.1} parent=1 // pred_region
      %88 = dma.done [#allocation4], 16
    $region25: #{tpu_custom_call.1} parent=1 // pred_fallthru
      _
    %89 = vsyncpa [#allocation4], 1

</llo_original>
